<compile_context>
chip_gen: v7x
topology: tpu7x:2x2x1
jax: 0.10.0
libtpu: 0.0.40
codegen_flags: <defaults>
</compile_context>

<pallas_src>
import jax
import jax.numpy as jnp
from jax import lax
from jax.experimental import pallas as pl
from jax.experimental.pallas import tpu as pltpu


def _round_up(v, m):
    return ((v + m - 1) // m) * m


def _shared_bottom_kernel(x_ref, w1_ref, b1_ref, w2_ref, b2_ref,
                          wh_ref, bh_ref, out_ref):
    io_dtype = x_ref.dtype
    # shared layer 1: Linear(input_dim, hidden) + ReLU   (Dropout = identity)
    h1 = jnp.dot(x_ref[...], w1_ref[...], preferred_element_type=jnp.float32)
    h1 = jnp.maximum(h1 + b1_ref[...], 0.0).astype(io_dtype)

    # shared layer 2: Linear(hidden, hidden // 2) + ReLU (Dropout = identity)
    h2 = jnp.dot(h1, w2_ref[...], preferred_element_type=jnp.float32)
    h2 = jnp.maximum(h2 + b2_ref[...], 0.0).astype(io_dtype)

    # fused task heads: one narrow (TILE_B, head_pad) matmul + bias
    out = jnp.dot(h2, wh_ref[...], preferred_element_type=jnp.float32) + bh_ref[...]
    out_ref[...] = out.astype(out_ref.dtype)


def prepare_params(params):
    """Fuse + pad the two task heads ONCE (outside the per-forward path)."""
    we, be = params["we"], params["be"]
    wf, bf = params["wf"], params["bf"]
    h2_dim, emotion_dim = we.shape
    focus_dim = wf.shape[1]
    head_dim = emotion_dim + focus_dim
    head_pad = max(8, _round_up(head_dim, 8))

    w_head = jnp.zeros((h2_dim, head_pad), we.dtype)
    w_head = w_head.at[:, :emotion_dim].set(we)
    w_head = w_head.at[:, emotion_dim:head_dim].set(wf)
    b_head = jnp.zeros((1, head_pad), be.dtype)
    b_head = b_head.at[:, :emotion_dim].set(be)
    b_head = b_head.at[:, emotion_dim:head_dim].set(bf)

    fused = dict(w1=params["w1"], b1=params["b1"],
                 w2=params["w2"], b2=params["b2"],
                 w_head=w_head, b_head=b_head,
                 emotion_dim=emotion_dim, focus_dim=focus_dim)
    return fused


def shared_bottom_mlp_forward(x, fused, *, tile_b=4096, io_dtype=None):
    """x: (B, input_dim). fused: output of prepare_params.

    Returns (emotion_out (B, emotion_dim), focus_out (B, focus_dim)).
    """
    B, input_dim = x.shape
    w1, b1 = fused["w1"], fused["b1"]
    w2, b2 = fused["w2"], fused["b2"]
    wh, bh = fused["w_head"], fused["b_head"]
    emotion_dim = fused["emotion_dim"]
    focus_dim = fused["focus_dim"]
    head_dim = emotion_dim + focus_dim

    hidden_dim = w1.shape[1]
    h2_dim = w2.shape[1]
    head_pad = wh.shape[1]

    # Optional bf16 I/O (halves HBM traffic on a mem-bound kernel).  Biases
    # stay f32; the MXU accumulates in f32 regardless.
    if io_dtype is not None:
        x = x.astype(io_dtype)
        w1 = w1.astype(io_dtype)
        w2 = w2.astype(io_dtype)
        wh = wh.astype(io_dtype)
    dtype = x.dtype
    itm = jnp.dtype(dtype).itemsize
    sub = 8 * (4 // itm)  # sublane granule: 8 for f32, 16 for bf16 packing

    # --- VMEM budget for the batch tile (minor dims lane-pad to 128) ---------
    lane = 128

    def lane_bytes(n, nbytes):
        return _round_up(max(n, 1), lane) * nbytes

    per_row_bytes = (2 * lane_bytes(input_dim, itm)    # x, double buffered
                     + 2 * lane_bytes(head_pad, itm)   # out, double buffered
                     + lane_bytes(hidden_dim, 4)       # h1 temp (f32)
                     + lane_bytes(h2_dim, 4))          # h2 temp (f32)
    weight_bytes = (2 * itm * (input_dim * hidden_dim + hidden_dim * h2_dim
                               + h2_dim * head_pad)
                    + 2 * 4 * (hidden_dim + h2_dim + head_pad))
    vmem_budget = 40 * 1024 * 1024   # headroom under v7x's 64 MiB / TC
    max_tb = max(sub, ((vmem_budget - weight_bytes) // per_row_bytes) // sub * sub)

    # --- Batch tiling (no wrapper-side pad; ragged last block is fine) -------
    tb = min(tile_b, _round_up(B, sub))
    tb = max(sub, _round_up(tb, sub))
    tb = min(tb, max_tb)
    # Keep >= 2 grid steps on large batches so ("parallel",) can use both
    # TensorCores on v7x megacore.
    if pl.cdiv(B, tb) < 2 and B > 2048:
        tb = max(sub, _round_up(pl.cdiv(B, 2), sub))
    grid = (pl.cdiv(B, tb),)

    # x / output tiles stream over the grid; weights stay resident (constant
    # block index -> no re-DMA per step).
    const2 = lambda i: (0, 0)
    in_specs = [
        pl.BlockSpec((tb, input_dim), lambda i: (i, 0)),       # x
        pl.BlockSpec((input_dim, hidden_dim), const2),         # w1
        pl.BlockSpec((1, hidden_dim), const2),                 # b1  (f32)
        pl.BlockSpec((hidden_dim, h2_dim), const2),            # w2
        pl.BlockSpec((1, h2_dim), const2),                     # b2  (f32)
        pl.BlockSpec((h2_dim, head_pad), const2),              # fused head W
        pl.BlockSpec((1, head_pad), const2),                   # fused head b
    ]
    out_spec = pl.BlockSpec((tb, head_pad), lambda i: (i, 0))
    out_shape = jax.ShapeDtypeStruct((B, head_pad), dtype)

    flops = 2 * B * (input_dim * hidden_dim
                     + hidden_dim * h2_dim
                     + h2_dim * head_pad)
    bytes_accessed = (itm * (B * input_dim + B * head_pad
                             + input_dim * hidden_dim
                             + hidden_dim * h2_dim
                             + h2_dim * head_pad)
                      + 4 * (hidden_dim + h2_dim + head_pad))

    fused_out = pl.pallas_call(
        _shared_bottom_kernel,
        out_shape=out_shape,
        grid=grid,
        in_specs=in_specs,
        out_specs=out_spec,
        compiler_params=pltpu.CompilerParams(
            dimension_semantics=("parallel",),
            vmem_limit_bytes=48 * 1024 * 1024),
        cost_estimate=pl.CostEstimate(
            flops=flops, transcendentals=0, bytes_accessed=bytes_accessed),
    )(x, w1, b1, w2, b2, wh, bh)

    emotion_out = lax.slice(fused_out, (0, 0), (B, emotion_dim))
    focus_out = lax.slice(fused_out, (0, emotion_dim), (B, head_dim))
    return emotion_out, focus_out


def init_params(key, input_dim, hidden_dim, emotion_output_dim, focus_output_dim):
    """Deterministic synthetic init. Weights stored as (in, out)."""
    ks = jax.random.split(key, 8)
    h2 = hidden_dim // 2

    def lin(kw, kb, fan_in, fan_out):
        bound = 1.0 / jnp.sqrt(fan_in)
        w = jax.random.uniform(kw, (fan_in, fan_out), jnp.float32, -bound, bound)
        b = jax.random.uniform(kb, (1, fan_out), jnp.float32, -bound, bound)
        return w, b

    w1, b1 = lin(ks[0], ks[1], input_dim, hidden_dim)
    w2, b2 = lin(ks[2], ks[3], hidden_dim, h2)
    we, be = lin(ks[4], ks[5], h2, emotion_output_dim)
    wf, bf = lin(ks[6], ks[7], h2, focus_output_dim)
    return dict(w1=w1, b1=b1, w2=w2, b2=b2, we=we, be=be, wf=wf, bf=bf)


def reference_forward(x, p):
    h1 = jnp.maximum(x @ p["w1"] + p["b1"], 0.0)
    h2 = jnp.maximum(h1 @ p["w2"] + p["b2"], 0.0)
    return h2 @ p["we"] + p["be"], h2 @ p["wf"] + p["bf"]


if __name__ == "__main__":
    # Small shapes consistent with the module's forward: x is (batch, input_dim)
    batch = 8
    input_dim = 16
    hidden_dim = 32          # hidden_dim // 2 = 16
    emotion_output_dim = 4
    focus_output_dim = 3

    key = jax.random.PRNGKey(0)
    kx, kp, kx2 = jax.random.split(key, 3)
    x = jax.random.normal(kx, (batch, input_dim), dtype=jnp.float32)
    params = init_params(kp, input_dim, hidden_dim, emotion_output_dim,
                         focus_output_dim)
    fused = prepare_params(params)   # head fusion hoisted out of per-call path

    emotion_out, focus_out = shared_bottom_mlp_forward(x, fused)
    jax.block_until_ready((emotion_out, focus_out))

    emo_ref, foc_ref = reference_forward(x, params)
    assert emotion_out.shape == (batch, emotion_output_dim)
    assert focus_out.shape == (batch, focus_output_dim)
    assert jnp.allclose(emotion_out, emo_ref, atol=1e-5, rtol=1e-5)
    assert jnp.allclose(focus_out, foc_ref, atol=1e-5, rtol=1e-5)

    # non-tile-aligned batch exercises the ragged (un-padded) last grid block
    batch2 = 200
    x2 = jax.random.normal(kx2, (batch2, input_dim), dtype=jnp.float32)
    e2, f2 = shared_bottom_mlp_forward(x2, fused, tile_b=64)
    jax.block_until_ready((e2, f2))
    e2_ref, f2_ref = reference_forward(x2, params)
    assert e2.shape == (batch2, emotion_output_dim)
    assert f2.shape == (batch2, focus_output_dim)
    assert jnp.allclose(e2, e2_ref, atol=1e-5, rtol=1e-5)
    assert jnp.allclose(f2, f2_ref, atol=1e-5, rtol=1e-5)

    # bf16 I/O path (halves HBM traffic on v6e/v7x); looser tolerance vs f32 ref
    e3, f3 = shared_bottom_mlp_forward(x2, fused, tile_b=64,
                                       io_dtype=jnp.bfloat16)
    jax.block_until_ready((e3, f3))
    assert jnp.allclose(e3.astype(jnp.float32), e2_ref, atol=1e-1, rtol=1e-1)
    assert jnp.allclose(f3.astype(jnp.float32), f2_ref, atol=1e-1, rtol=1e-1)

    print("KERNEL_OK")
</pallas_src>

<mosaic_0001>
module attributes {stable_mosaic.version = 11 : i64} {
  func.func @_shared_bottom_kernel(%arg0: i32, %arg1: memref<8x16xf32, #tpu.memory_space<vmem>>, %arg2: memref<16x32xf32, #tpu.memory_space<vmem>>, %arg3: memref<1x32xf32, #tpu.memory_space<vmem>>, %arg4: memref<32x16xf32, #tpu.memory_space<vmem>>, %arg5: memref<1x16xf32, #tpu.memory_space<vmem>>, %arg6: memref<16x8xf32, #tpu.memory_space<vmem>>, %arg7: memref<1x8xf32, #tpu.memory_space<vmem>>, %arg8: memref<8x8xf32, #tpu.memory_space<vmem>>) attributes {dimension_semantics = [#tpu.dimension_semantics<parallel>], iteration_bounds = array<i64: 1>, scalar_prefetch = 0 : i64, scratch_operands = 0 : i64, tpu.core_type = #tpu.core_type<tc>, window_params = [{transform_indices = @transform_0, window_bounds = array<i64: 8, 16>}, {pipeline_mode = #tpu.pipeline_mode<synchronous>, transform_indices = @transform_1, window_bounds = array<i64: 16, 32>}, {pipeline_mode = #tpu.pipeline_mode<synchronous>, transform_indices = @transform_2, window_bounds = array<i64: 1, 32>}, {pipeline_mode = #tpu.pipeline_mode<synchronous>, transform_indices = @transform_3, window_bounds = array<i64: 32, 16>}, {pipeline_mode = #tpu.pipeline_mode<synchronous>, transform_indices = @transform_4, window_bounds = array<i64: 1, 16>}, {pipeline_mode = #tpu.pipeline_mode<synchronous>, transform_indices = @transform_5, window_bounds = array<i64: 16, 8>}, {pipeline_mode = #tpu.pipeline_mode<synchronous>, transform_indices = @transform_6, window_bounds = array<i64: 1, 8>}, {transform_indices = @transform_7, window_bounds = array<i64: 8, 8>}]} {
    %c0 = arith.constant 0 : index
    %c0_0 = arith.constant 0 : index
    %0 = vector.load %arg1[%c0, %c0_0] : memref<8x16xf32, #tpu.memory_space<vmem>>, vector<8x16xf32>
    %c0_1 = arith.constant 0 : index
    %c0_2 = arith.constant 0 : index
    %1 = vector.load %arg2[%c0_1, %c0_2] : memref<16x32xf32, #tpu.memory_space<vmem>>, vector<16x32xf32>
    %cst = arith.constant dense<0.000000e+00> : vector<8x32xf32>
    %2 = tpu.matmul %0, %1, %cst {dimension_numbers = #tpu.dot_dimension_numbers<[1], [0], [0], [1], [0, 0, 1, 1], [], []>} : vector<8x16xf32>, vector<16x32xf32>, vector<8x32xf32> -> vector<8x32xf32>
    %c0_3 = arith.constant 0 : index
    %c0_4 = arith.constant 0 : index
    %3 = vector.load %arg3[%c0_3, %c0_4] : memref<1x32xf32, #tpu.memory_space<vmem>>, vector<1x32xf32>
    %4 = vector.broadcast %3 : vector<1x32xf32> to vector<8x32xf32>
    %5 = arith.addf %2, %4 : vector<8x32xf32>
    %cst_5 = arith.constant 0.000000e+00 : f32
    %6 = vector.broadcast %cst_5 : f32 to vector<8x32xf32>
    %7 = arith.maximumf %5, %6 : vector<8x32xf32>
    %c0_6 = arith.constant 0 : index
    %c0_7 = arith.constant 0 : index
    %8 = vector.load %arg4[%c0_6, %c0_7] : memref<32x16xf32, #tpu.memory_space<vmem>>, vector<32x16xf32>
    %cst_8 = arith.constant dense<0.000000e+00> : vector<8x16xf32>
    %9 = tpu.matmul %7, %8, %cst_8 {dimension_numbers = #tpu.dot_dimension_numbers<[1], [0], [0], [1], [0, 0, 1, 1], [], []>} : vector<8x32xf32>, vector<32x16xf32>, vector<8x16xf32> -> vector<8x16xf32>
    %c0_9 = arith.constant 0 : index
    %c0_10 = arith.constant 0 : index
    %10 = vector.load %arg5[%c0_9, %c0_10] : memref<1x16xf32, #tpu.memory_space<vmem>>, vector<1x16xf32>
    %11 = vector.broadcast %10 : vector<1x16xf32> to vector<8x16xf32>
    %12 = arith.addf %9, %11 : vector<8x16xf32>
    %cst_11 = arith.constant 0.000000e+00 : f32
    %13 = vector.broadcast %cst_11 : f32 to vector<8x16xf32>
    %14 = arith.maximumf %12, %13 : vector<8x16xf32>
    %c0_12 = arith.constant 0 : index
    %c0_13 = arith.constant 0 : index
    %15 = vector.load %arg6[%c0_12, %c0_13] : memref<16x8xf32, #tpu.memory_space<vmem>>, vector<16x8xf32>
    %cst_14 = arith.constant dense<0.000000e+00> : vector<8x8xf32>
    %16 = tpu.matmul %14, %15, %cst_14 {dimension_numbers = #tpu.dot_dimension_numbers<[1], [0], [0], [1], [0, 0, 1, 1], [], []>} : vector<8x16xf32>, vector<16x8xf32>, vector<8x8xf32> -> vector<8x8xf32>
    %c0_15 = arith.constant 0 : index
    %c0_16 = arith.constant 0 : index
    %17 = vector.load %arg7[%c0_15, %c0_16] : memref<1x8xf32, #tpu.memory_space<vmem>>, vector<1x8xf32>
    %18 = vector.broadcast %17 : vector<1x8xf32> to vector<8x8xf32>
    %19 = arith.addf %16, %18 : vector<8x8xf32>
    %c0_17 = arith.constant 0 : index
    %c0_18 = arith.constant 0 : index
    %20 = vector.load %arg8[%c0_17, %c0_18] : memref<8x8xf32, #tpu.memory_space<vmem>>, vector<8x8xf32>
    tpu.vector_store %arg8[%c0_17, %c0_18], %19 {strides = array<i32>} : memref<8x8xf32, #tpu.memory_space<vmem>>, vector<8x8xf32>,
    return
  }
  func.func @transform_0(%arg0: i32) -> (i32, i32) {
    %c0_i32 = arith.constant 0 : i32
    %c0_i32_0 = arith.constant 0 : i32
    return %arg0, %c0_i32 : i32, i32
  }
  func.func @transform_1(%arg0: i32) -> (i32, i32) {
    %c0_i32 = arith.constant 0 : i32
    %c0_i32_0 = arith.constant 0 : i32
    %c0_i32_1 = arith.constant 0 : i32
    return %c0_i32, %c0_i32_0 : i32, i32
  }
  func.func @transform_2(%arg0: i32) -> (i32, i32) {
    %c0_i32 = arith.constant 0 : i32
    %c0_i32_0 = arith.constant 0 : i32
    %c0_i32_1 = arith.constant 0 : i32
    return %c0_i32, %c0_i32_0 : i32, i32
  }
  func.func @transform_3(%arg0: i32) -> (i32, i32) {
    %c0_i32 = arith.constant 0 : i32
    %c0_i32_0 = arith.constant 0 : i32
    %c0_i32_1 = arith.constant 0 : i32
    return %c0_i32, %c0_i32_0 : i32, i32
  }
  func.func @transform_4(%arg0: i32) -> (i32, i32) {
    %c0_i32 = arith.constant 0 : i32
    %c0_i32_0 = arith.constant 0 : i32
    %c0_i32_1 = arith.constant 0 : i32
    return %c0_i32, %c0_i32_0 : i32, i32
  }
  func.func @transform_5(%arg0: i32) -> (i32, i32) {
    %c0_i32 = arith.constant 0 : i32
    %c0_i32_0 = arith.constant 0 : i32
    %c0_i32_1 = arith.constant 0 : i32
    return %c0_i32, %c0_i32_0 : i32, i32
  }
  func.func @transform_6(%arg0: i32) -> (i32, i32) {
    %c0_i32 = arith.constant 0 : i32
    %c0_i32_0 = arith.constant 0 : i32
    %c0_i32_1 = arith.constant 0 : i32
    return %c0_i32, %c0_i32_0 : i32, i32
  }
  func.func @transform_7(%arg0: i32) -> (i32, i32) {
    %c0_i32 = arith.constant 0 : i32
    %c0_i32_0 = arith.constant 0 : i32
    return %arg0, %c0_i32 : i32, i32
  }
}

</mosaic_0001>

<llo_original>
// kernel: tpu_custom_call.1
$region0: #{tpu_custom_call.1}
  #allocation0 [shape = 'u32[]', space=smem, size = 0x4, offset = 0x4, fixed_abs, tag = 'smem constant byte address 0x4 - core index']
  #allocation1 [shape = 'u32[144,128]{1,0:T(1,128)}', space=vmem, size = 0x12000, scoped, tag = 'internal scratch']
  %s0 = inlined_call_operand.vmem [shape: f32[8,16], index: 0, kind: input, shape index: {}]
  %s1 = inlined_call_operand.vmem [shape: f32[16,32], index: 1, kind: input, shape index: {}]
  %s2 = inlined_call_operand.vmem [shape: f32[1,32], index: 2, kind: input, shape index: {}]
  %s3 = inlined_call_operand.vmem [shape: f32[32,16], index: 3, kind: input, shape index: {}]
  %s4 = inlined_call_operand.vmem [shape: f32[1,16], index: 4, kind: input, shape index: {}]
  %s5 = inlined_call_operand.vmem [shape: f32[16,8], index: 5, kind: input, shape index: {}]
  %s6 = inlined_call_operand.vmem [shape: f32[1,8], index: 6, kind: input, shape index: {}]
  %s7 = inlined_call_operand.hbm [shape: f32[8,8], index: 7, kind: output, shape index: {}]
  %s8 = sld [smem:[#allocation0]]
  $region38: #{tpu_custom_call.1} parent=0
    _
  %s10 = ssub.s32 1, %s8
  %s11 = scalar_select 0, %s10, %s8
  $region1: #{tpu_custom_call.1} parent=0
    #allocation2 [shape = 'u8[4096]{0}', space=vmem, size = 0x1000, scoped, tag = 'output window, operand 0, single buffered']
    #allocation3 [shape = 's32[1]{0}', space=sflag, size = 0x4, scoped, tag = 'scoped memory for tpu_custom_call.1']
    %12 = vsyncpa [#allocation3], 0
    // Predicated region
    $region2: #{tpu_custom_call.1} parent=1 // pred_check
      _
    $region3: #{tpu_custom_call.1} parent=1 // pred_check_branch
      %14 = sbr.rel (0) target = $region5
    $region4: #{tpu_custom_call.1} parent=1 // pred_region
      _
    $region5: #{tpu_custom_call.1} parent=1 // pred_fallthru
      _
    // Predicated region
    $region6: #{tpu_custom_call.1} parent=1 // pred_check
      _
    $region7: #{tpu_custom_call.1} parent=1 // pred_check_branch
      %16 = sbr.rel (0) target = $region9
    $region8: #{tpu_custom_call.1} parent=1 // pred_region
      _
    $region9: #{tpu_custom_call.1} parent=1 // pred_fallthru
      _
    // Predicated region
    $region10: #{tpu_custom_call.1} parent=1 // pred_check
      _
    $region11: #{tpu_custom_call.1} parent=1 // pred_check_branch
      %18 = sbr.rel (0) target = $region13
    $region12: #{tpu_custom_call.1} parent=1 // pred_region
      _
    $region13: #{tpu_custom_call.1} parent=1 // pred_fallthru
      _
    // Predicated region
    $region14: #{tpu_custom_call.1} parent=1 // pred_check
      _
    $region15: #{tpu_custom_call.1} parent=1 // pred_check_branch
      %20 = sbr.rel (0) target = $region17
    $region16: #{tpu_custom_call.1} parent=1 // pred_region
      _
    $region17: #{tpu_custom_call.1} parent=1 // pred_fallthru
      _
    // Predicated region
    $region18: #{tpu_custom_call.1} parent=1 // pred_check
      _
    $region19: #{tpu_custom_call.1} parent=1 // pred_check_branch
      %22 = sbr.rel (0) target = $region21
    $region20: #{tpu_custom_call.1} parent=1 // pred_region
      _
    $region21: #{tpu_custom_call.1} parent=1 // pred_fallthru
      _
    // Predicated region
    $region22: #{tpu_custom_call.1} parent=1 // pred_check
      _
    $region23: #{tpu_custom_call.1} parent=1 // pred_check_branch
      %24 = sbr.rel (0) target = $region25
    $region24: #{tpu_custom_call.1} parent=1 // pred_region
      _
    $region25: #{tpu_custom_call.1} parent=1 // pred_fallthru
      _
    // Predicated region
    $region26: #{tpu_custom_call.1} parent=1 // pred_check
      _
    $region27: #{tpu_custom_call.1} parent=1 // pred_check_branch
      %26 = sbr.rel (0) target = $region29
    $region28: #{tpu_custom_call.1} parent=1 // pred_region
      _
    $region29: #{tpu_custom_call.1} parent=1 // pred_fallthru
      _
    %v27 = vld [vmem:[%s0] sm:$0xff]
    %v28 = vld [vmem:[%s1] sm:$0xff]
    %v29 = vld [vmem:[%s1 + $0x8] sm:$0xff]
    %v30 = vld [vmem:[%s2] sm:$0x1]
    %v32 = vlaneseq
    %v33 = vshrl.u32 %v32, 7
    %v34 = vsub.s32 0, %v33
    %v35 = vrot.slane %v30, %v34
    %vm37 = vcmask 130048
    %v39 = vsel %vm37, %v27, 0
    %41 = vmatprep.subr.mxu0 0.0
    %42 = vmatpush1.msra.mxu0 %v28
    %43 = vmatprep.subr.mxu0 0.0
    %44 = vmatpush1.msra.mxu0 %v29
    %45 = vmatprep.subr.mxu0 0.0
    %46 = vmatpush1.msra.mxu0 0.0
    %47 = vmatprep.subr.mxu0 0.0
    %48 = vmatpush1.msra.mxu0 0.0
    %49 = vmatprep.subr.mxu0 0.0
    %50 = vmatpush1.msra.mxu0 0.0
    %51 = vmatprep.subr.mxu0 0.0
    %52 = vmatpush1.msra.mxu0 0.0
    %53 = vmatprep.subr.mxu0 0.0
    %54 = vmatpush1.msra.mxu0 0.0
    %55 = vmatprep.subr.mxu0 0.0
    %56 = vmatpush1.msra.mxu0 0.0
    %57 = vmatprep.subr.mxu0 0.0
    %58 = vmatpush1.msra.mxu0 0.0
    %59 = vmatprep.subr.mxu0 0.0
    %60 = vmatpush1.msra.mxu0 0.0
    %61 = vmatprep.subr.mxu0 0.0
    %62 = vmatpush1.msra.mxu0 0.0
    %63 = vmatprep.subr.mxu0 0.0
    %64 = vmatpush1.msra.mxu0 0.0
    %65 = vmatprep.subr.mxu0 0.0
    %66 = vmatpush1.msra.mxu0 0.0
    %67 = vmatprep.subr.mxu0 0.0
    %68 = vmatpush1.msra.mxu0 0.0
    %69 = vmatprep.subr.mxu0 0.0
    %70 = vmatpush1.msra.mxu0 0.0
    %71 = vmatprep.subr.mxu0 0.0
    %72 = vmatpush1.msra.mxu0 0.0
    %73 = vmatprep.subr.mxu0 0.0
    %74 = vmatpush1.msra.mxu0 0.0
    %75 = vmatprep.subr.mxu0 0.0
    %76 = vmatpush1.msra.mxu0 0.0
    %77 = vmatprep.subr.mxu0 0.0
    %78 = vmatpush1.msra.mxu0 0.0
    %79 = vmatprep.subr.mxu0 0.0
    %80 = vmatpush1.msra.mxu0 0.0
    %81 = vmatprep.subr.mxu0 0.0
    %82 = vmatpush1.msra.mxu0 0.0
    %83 = vmatprep.subr.mxu0 0.0
    %84 = vmatpush1.msra.mxu0 0.0
    %85 = vmatprep.subr.mxu0 0.0
    %86 = vmatpush1.msra.mxu0 0.0
    %87 = vmatprep.subr.mxu0 0.0
    %88 = vmatpush1.msra.mxu0 0.0
    %89 = vmatprep.subr.mxu0 0.0
    %90 = vmatpush1.msra.mxu0 0.0
    %91 = vmatprep.subr.mxu0 0.0
    %92 = vmatpush1.msra.mxu0 0.0
    %93 = vmatprep.subr.mxu0 0.0
    %94 = vmatpush1.msra.mxu0 0.0
    %95 = vmatprep.subr.mxu0 0.0
    %96 = vmatpush1.msra.mxu0 0.0
    %97 = vmatprep.subr.mxu0 0.0
    %98 = vmatpush1.msra.mxu0 0.0
    %99 = vmatprep.subr.mxu0 0.0
    %100 = vmatpush1.msra.mxu0 0.0
    %101 = vmatprep.subr.mxu0 0.0
    %102 = vmatpush1.msra.mxu0 0.0
    %103 = vmatprep.subr.mxu0 0.0
    %104 = vmatpush1.msra.mxu0 0.0
    %105 = vmatprep.mubr.f32.mxu0 0.0
    %106 = vmatmul.mubr.f32.gmra.mrb[0].mxu0 %v39
    %v107 = vpop.f32.mrb[0].mxu0
    %v108 = vadd.f32 %v35, %v107
    %v109 = vpop.f32.mrb[0].mxu0
    %110 = vdwg.mxu0
    %v111 = vmax.f32 %v108, 0.0
    %v112 = vld [vmem:[%s3] sm:$0xff]
    %v113 = vld [vmem:[%s3 + $0x8] sm:$0xff]
    %v114 = vld [vmem:[%s3 + $0x10] sm:$0xff]
    %v115 = vld [vmem:[%s3 + $0x18] sm:$0xff]
    %v116 = vld [vmem:[%s4] sm:$0x1]
    %v118 = vlaneseq
    %v119 = vshrl.u32 %v118, 7
    %v120 = vsub.s32 0, %v119
    %v121 = vrot.slane %v116, %v120
    %vm123 = vcmask 261120
    %v125 = vsel %vm123, %v111, 0
    %127 = vmatprep.subr.mxu0 0.0
    %128 = vmatpush1.msra.mxu0 %v112
    %129 = vmatprep.subr.mxu0 0.0
    %130 = vmatpush1.msra.mxu0 %v113
    %131 = vmatprep.subr.mxu0 0.0
    %132 = vmatpush1.msra.mxu0 %v114
    %133 = vmatprep.subr.mxu0 0.0
    %134 = vmatpush1.msra.mxu0 %v115
    %135 = vmatprep.subr.mxu0 0.0
    %136 = vmatpush1.msra.mxu0 0.0
    %137 = vmatprep.subr.mxu0 0.0
    %138 = vmatpush1.msra.mxu0 0.0
    %139 = vmatprep.subr.mxu0 0.0
    %140 = vmatpush1.msra.mxu0 0.0
    %141 = vmatprep.subr.mxu0 0.0
    %142 = vmatpush1.msra.mxu0 0.0
    %143 = vmatprep.subr.mxu0 0.0
    %144 = vmatpush1.msra.mxu0 0.0
    %145 = vmatprep.subr.mxu0 0.0
    %146 = vmatpush1.msra.mxu0 0.0
    %147 = vmatprep.subr.mxu0 0.0
    %148 = vmatpush1.msra.mxu0 0.0
    %149 = vmatprep.subr.mxu0 0.0
    %150 = vmatpush1.msra.mxu0 0.0
    %151 = vmatprep.subr.mxu0 0.0
    %152 = vmatpush1.msra.mxu0 0.0
    %153 = vmatprep.subr.mxu0 0.0
    %154 = vmatpush1.msra.mxu0 0.0
    %155 = vmatprep.subr.mxu0 0.0
    %156 = vmatpush1.msra.mxu0 0.0
    %157 = vmatprep.subr.mxu0 0.0
    %158 = vmatpush1.msra.mxu0 0.0
    %159 = vmatprep.subr.mxu0 0.0
    %160 = vmatpush1.msra.mxu0 0.0
    %161 = vmatprep.subr.mxu0 0.0
    %162 = vmatpush1.msra.mxu0 0.0
    %163 = vmatprep.subr.mxu0 0.0
    %164 = vmatpush1.msra.mxu0 0.0
    %165 = vmatprep.subr.mxu0 0.0
    %166 = vmatpush1.msra.mxu0 0.0
    %167 = vmatprep.subr.mxu0 0.0
    %168 = vmatpush1.msra.mxu0 0.0
    %169 = vmatprep.subr.mxu0 0.0
    %170 = vmatpush1.msra.mxu0 0.0
    %171 = vmatprep.subr.mxu0 0.0
    %172 = vmatpush1.msra.mxu0 0.0
    %173 = vmatprep.subr.mxu0 0.0
    %174 = vmatpush1.msra.mxu0 0.0
    %175 = vmatprep.subr.mxu0 0.0
    %176 = vmatpush1.msra.mxu0 0.0
    %177 = vmatprep.subr.mxu0 0.0
    %178 = vmatpush1.msra.mxu0 0.0
    %179 = vmatprep.subr.mxu0 0.0
    %180 = vmatpush1.msra.mxu0 0.0
    %181 = vmatprep.subr.mxu0 0.0
    %182 = vmatpush1.msra.mxu0 0.0
    %183 = vmatprep.subr.mxu0 0.0
    %184 = vmatpush1.msra.mxu0 0.0
    %185 = vmatprep.subr.mxu0 0.0
    %186 = vmatpush1.msra.mxu0 0.0
    %187 = vmatprep.subr.mxu0 0.0
    %188 = vmatpush1.msra.mxu0 0.0
    %189 = vmatprep.subr.mxu0 0.0
    %190 = vmatpush1.msra.mxu0 0.0
    %191 = vmatprep.mubr.f32.mxu0 0.0
    %192 = vmatmul.mubr.f32.gmra.mrb[0].mxu0 %v125
    %v193 = vpop.f32.mrb[0].mxu0
    %v194 = vadd.f32 %v121, %v193
    %v195 = vpop.f32.mrb[0].mxu0
    %196 = vdwg.mxu0
    %v197 = vmax.f32 %v194, 0.0
    %v198 = vld [vmem:[%s5] sm:$0xff]
    %v199 = vld [vmem:[%s5 + $0x8] sm:$0xff]
    %v200 = vld [vmem:[%s6] sm:$0x1]
    %v202 = vlaneseq
    %v203 = vshrl.u32 %v202, 7
    %v204 = vsub.s32 0, %v203
    %v205 = vrot.slane %v200, %v204
    %v208 = vsel %vm37, %v197, 0
    %210 = vmatprep.subr.mxu0 0.0
    %211 = vmatpush1.msra.mxu0 %v198
    %212 = vmatprep.subr.mxu0 0.0
    %213 = vmatpush1.msra.mxu0 %v199
    %214 = vmatprep.subr.mxu0 0.0
    %215 = vmatpush1.msra.mxu0 0.0
    %216 = vmatprep.subr.mxu0 0.0
    %217 = vmatpush1.msra.mxu0 0.0
    %218 = vmatprep.subr.mxu0 0.0
    %219 = vmatpush1.msra.mxu0 0.0
    %220 = vmatprep.subr.mxu0 0.0
    %221 = vmatpush1.msra.mxu0 0.0
    %222 = vmatprep.subr.mxu0 0.0
    %223 = vmatpush1.msra.mxu0 0.0
    %224 = vmatprep.subr.mxu0 0.0
    %225 = vmatpush1.msra.mxu0 0.0
    %226 = vmatprep.subr.mxu0 0.0
    %227 = vmatpush1.msra.mxu0 0.0
    %228 = vmatprep.subr.mxu0 0.0
    %229 = vmatpush1.msra.mxu0 0.0
    %230 = vmatprep.subr.mxu0 0.0
    %231 = vmatpush1.msra.mxu0 0.0
    %232 = vmatprep.subr.mxu0 0.0
    %233 = vmatpush1.msra.mxu0 0.0
    %234 = vmatprep.subr.mxu0 0.0
    %235 = vmatpush1.msra.mxu0 0.0
    %236 = vmatprep.subr.mxu0 0.0
    %237 = vmatpush1.msra.mxu0 0.0
    %238 = vmatprep.subr.mxu0 0.0
    %239 = vmatpush1.msra.mxu0 0.0
    %240 = vmatprep.subr.mxu0 0.0
    %241 = vmatpush1.msra.mxu0 0.0
    %242 = vmatprep.subr.mxu0 0.0
    %243 = vmatpush1.msra.mxu0 0.0
    %244 = vmatprep.subr.mxu0 0.0
    %245 = vmatpush1.msra.mxu0 0.0
    %246 = vmatprep.subr.mxu0 0.0
    %247 = vmatpush1.msra.mxu0 0.0
    %248 = vmatprep.subr.mxu0 0.0
    %249 = vmatpush1.msra.mxu0 0.0
    %250 = vmatprep.subr.mxu0 0.0
    %251 = vmatpush1.msra.mxu0 0.0
    %252 = vmatprep.subr.mxu0 0.0
    %253 = vmatpush1.msra.mxu0 0.0
    %254 = vmatprep.subr.mxu0 0.0
    %255 = vmatpush1.msra.mxu0 0.0
    %256 = vmatprep.subr.mxu0 0.0
    %257 = vmatpush1.msra.mxu0 0.0
    %258 = vmatprep.subr.mxu0 0.0
    %259 = vmatpush1.msra.mxu0 0.0
    %260 = vmatprep.subr.mxu0 0.0
    %261 = vmatpush1.msra.mxu0 0.0
    %262 = vmatprep.subr.mxu0 0.0
    %263 = vmatpush1.msra.mxu0 0.0
    %264 = vmatprep.subr.mxu0 0.0
    %265 = vmatpush1.msra.mxu0 0.0
    %266 = vmatprep.subr.mxu0 0.0
    %267 = vmatpush1.msra.mxu0 0.0
    %268 = vmatprep.subr.mxu0 0.0
    %269 = vmatpush1.msra.mxu0 0.0
    %270 = vmatprep.subr.mxu0 0.0
    %271 = vmatpush1.msra.mxu0 0.0
    %272 = vmatprep.subr.mxu0 0.0
    %273 = vmatpush1.msra.mxu0 0.0
    %274 = vmatprep.mubr.f32.mxu0 0.0
    %275 = vmatmul.mubr.f32.gmra.mrb[0].mxu0 %v208
    %v276 = vpop.f32.mrb[0].mxu0
    %v277 = vadd.f32 %v205, %v276
    %v278 = vpop.f32.mrb[0].mxu0
    %279 = vdwg.mxu0
    %vm280 = vcmask 64512
    %281 = vst.msk [vmem:[#allocation2] sm:$0xff] %vm280, %v277
    // Predicated region
    $region30: #{tpu_custom_call.1} parent=1 // pred_check
      _
    $region31: #{tpu_custom_call.1} parent=1 // pred_check_branch
      %283 = sbr.rel (0) target = $region33
    $region32: #{tpu_custom_call.1} parent=1 // pred_region
      %s285 = ssub.s32 128, 128
      %286 = vsyncadd [#allocation3], %s285
      %s288 = sshll.u32 [#allocation2], 4
      %s289 = int_to_ptr.vmem [resolvable:$true] %s288
      %291 = dma.vmem_to_hbm [thread:$0]  %s289, 128, %s7, [#allocation3]
    $region33: #{tpu_custom_call.1} parent=1 // pred_fallthru
      _
    // Predicated region
    $region34: #{tpu_custom_call.1} parent=1 // pred_check
      _
    $region35: #{tpu_custom_call.1} parent=1 // pred_check_branch
      %293 = sbr.rel (0) target = $region37
    $region36: #{tpu_custom_call.1} parent=1 // pred_region
      %294 = dma.done [#allocation3], 128
    $region37: #{tpu_custom_call.1} parent=1 // pred_fallthru
      _
    %295 = vsyncpa [#allocation3], 1

</llo_original>
